<compile_context>
chip_gen: v6e
topology: v6e:2x2x1
jax: 0.10.0
libtpu: 0.0.40
codegen_flags: <defaults>
</compile_context>

<pallas_src>
import jax
import jax.numpy as jnp
from jax import lax
from jax.experimental import pallas as pl
from jax.experimental.pallas import tpu as pltpu


def _round_up(x, m):
    return ((x + m - 1) // m) * m


def mlp_kernel(x_ref, w1_ref, b1_ref, w2_ref, b2_ref, w3_ref, b3_ref, o_ref):
    x = x_ref[...]                                           # (tb, 52)
    # h1^T = W1 @ x^T -> (13, tb): contract dim 1 of both operands (MXU,
    # f32 accumulate). Equivalent to (x @ W1^T)^T of the PyTorch Linear.
    h1 = lax.dot_general(w1_ref[...], x, (((1,), (1,)), ((), ())),
                         preferred_element_type=jnp.float32)
    h1 = jnp.maximum(h1 + b1_ref[...], 0.0)                  # (13, tb) f32
    # h2^T = W2 @ h1^T -> (52, tb)
    h2 = jnp.dot(w2_ref[...], h1.astype(w2_ref.dtype),
                 preferred_element_type=jnp.float32)
    h2 = jnp.maximum(h2 + b2_ref[...], 0.0)                  # (52, tb) f32
    # logit^T = W3 @ h2^T -> (1, tb): lane-dense, so the sigmoid + store below
    # touch tb/128 full vregs instead of tb/8 one-lane vregs.
    logit = jnp.dot(w3_ref[...], h2.astype(w3_ref.dtype),
                    preferred_element_type=jnp.float32) + b3_ref[...]
    # sigmoid(z) = 1 / (1 + exp(-z)); both transcendentals on the EUP slot.
    o_ref[...] = pl.reciprocal(1.0 + jnp.exp(-logit), approx=True)


def floodability_forward(x, params, *, tile_b=4096, compute_dtype=jnp.float32):
    """x: (B, 52). params in PyTorch nn.Linear layout:
    (w1 (13,52), b1 (13,), w2 (52,13), b2 (52,), w3 (1,52), b3 (1,)).
    Returns sigmoid probabilities of shape (B, 1), float32."""
    w1, b1, w2, b2, w3, b3 = params
    B, F = x.shape
    assert F == 52

    # ---- batch-tile selection ----
    # Lane-dense (1, tb) output blocks require tb to be a multiple of 128.
    b_ceil = _round_up(B, 128)
    tb = min(tile_b, b_ceil)
    # For large batches cap the tile so the grid has >= 4 steps: the batch
    # axis is marked "parallel" and splits across both TensorCores on v7x
    # (tiles stay >= 512 rows so the ~0.35us per-step overhead is negligible).
    if b_ceil >= 4 * 512:
        tb = min(tb, _round_up(pl.cdiv(b_ceil, 4), 128))
    n_tiles = pl.cdiv(B, tb)
    b_pad = n_tiles * tb          # only the OUTPUT is allocated padded
    grid = (n_tiles,)

    # MXU operand dtype (bf16 recommended on v6e/v7x); biases / accumulation
    # / activations stay f32.
    x = x.astype(compute_dtype)
    w1c = w1.astype(compute_dtype)
    w2c = w2.astype(compute_dtype)
    w3c = w3.astype(compute_dtype)
    b1c = b1.reshape(-1, 1).astype(jnp.float32)   # (13, 1)
    b2c = b2.reshape(-1, 1).astype(jnp.float32)   # (52, 1)
    b3c = b3.reshape(1, 1).astype(jnp.float32)    # (1, 1)

    # Constant block index -> parameters DMA'd once and kept VMEM-resident.
    def const(arr):
        return pl.BlockSpec(arr.shape, lambda i, _n=arr.ndim: (0,) * _n)

    flops = 2 * B * (52 * 13 + 13 * 52 + 52)
    param_bytes = sum(int(a.size) * a.dtype.itemsize
                      for a in (w1c, b1c, w2c, b2c, w3c, b3c))
    bytes_accessed = B * 52 * x.dtype.itemsize + B * 4 + param_bytes

    out = pl.pallas_call(
        mlp_kernel,
        out_shape=jax.ShapeDtypeStruct((1, b_pad), jnp.float32),
        grid=grid,
        in_specs=[
            # x streams in (tb, 52) tiles; the last tile may read past row B
            # (masked/ragged block) - those lanes are sliced off below.
            pl.BlockSpec((tb, 52), lambda i: (i, 0)),
            const(w1c), const(b1c),
            const(w2c), const(b2c),
            const(w3c), const(b3c),
        ],
        out_specs=pl.BlockSpec((1, tb), lambda i: (0, i)),
        compiler_params=pltpu.CompilerParams(
            dimension_semantics=("parallel",)),
        cost_estimate=pl.CostEstimate(
            flops=flops, bytes_accessed=bytes_accessed, transcendentals=2 * B),
    )(x, w1c, b1c, w2c, b2c, w3c, b3c)

    # (1, b_pad) lane-dense kernel output -> (B, 1) like the PyTorch module.
    return out[:, :B].reshape(B, 1)


def init_params(key):
    """Synthetic parameters in PyTorch nn.Linear layout:
    weight (out_features, in_features), bias (out_features,)."""
    k1, k2, k3, k4, k5, k6 = jax.random.split(key, 6)
    w1 = jax.random.normal(k1, (13, 52), jnp.float32) * 0.1
    b1 = jax.random.normal(k2, (13,), jnp.float32) * 0.1
    w2 = jax.random.normal(k3, (52, 13), jnp.float32) * 0.1
    b2 = jax.random.normal(k4, (52,), jnp.float32) * 0.1
    w3 = jax.random.normal(k5, (1, 52), jnp.float32) * 0.1
    b3 = jax.random.normal(k6, (1,), jnp.float32) * 0.1
    return (w1, b1, w2, b2, w3, b3)


def reference_forward(x, params):
    w1, b1, w2, b2, w3, b3 = params
    h1 = jnp.maximum(x @ w1.T + b1, 0.0)
    h2 = jnp.maximum(h1 @ w2.T + b2, 0.0)
    return jax.nn.sigmoid(h2 @ w3.T + b3)


if __name__ == "__main__":
    key = jax.random.PRNGKey(0)
    kx1, kx2, kp = jax.random.split(key, 3)
    params = init_params(kp)

    # Small batch: single tile, ragged input block (16 rows read into a
    # 128-row block; extra lanes sliced off).
    x1 = jax.random.normal(kx1, (16, 52), jnp.float32)
    out1 = jax.block_until_ready(floodability_forward(x1, params))
    ref1 = reference_forward(x1, params)
    assert out1.shape == (16, 1)
    assert jnp.allclose(out1, ref1, atol=1e-3, rtol=1e-3)

    # Multi-step grid with a ragged last tile: 300 rows, 128-row tiles -> grid=(3,).
    x2 = jax.random.normal(kx2, (300, 52), jnp.float32)
    out2 = jax.block_until_ready(floodability_forward(x2, params, tile_b=128))
    ref2 = reference_forward(x2, params)
    assert out2.shape == (300, 1)
    assert jnp.allclose(out2, ref2, atol=1e-3, rtol=1e-3)

    # bf16 MXU operands (recommended on v6e/v7x); activations/accumulation
    # stay f32, so only a loosened tolerance vs the f32 reference is needed.
    out3 = jax.block_until_ready(
        floodability_forward(x2, params, tile_b=128, compute_dtype=jnp.bfloat16))
    assert out3.shape == (300, 1)
    assert jnp.allclose(out3, ref2, atol=5e-2, rtol=5e-2)

    # TODO(synk): callers that can supply x already in (52, B) layout (or
    # bf16) would additionally save the in-MXU transpose / the wrapper cast.
    print("KERNEL_OK")
</pallas_src>

<mosaic_0001>
module attributes {stable_mosaic.version = 11 : i64} {
  func.func @mlp_kernel(%arg0: i32, %arg1: memref<128x52xf32, #tpu.memory_space<vmem>>, %arg2: memref<13x52xf32, #tpu.memory_space<vmem>>, %arg3: memref<13x1xf32, #tpu.memory_space<vmem>>, %arg4: memref<52x13xf32, #tpu.memory_space<vmem>>, %arg5: memref<52x1xf32, #tpu.memory_space<vmem>>, %arg6: memref<1x52xf32, #tpu.memory_space<vmem>>, %arg7: memref<1x1xf32, #tpu.memory_space<vmem>>, %arg8: memref<1x128xf32, #tpu.memory_space<vmem>>) attributes {dimension_semantics = [#tpu.dimension_semantics<parallel>], iteration_bounds = array<i64: 1>, scalar_prefetch = 0 : i64, scratch_operands = 0 : i64, tpu.core_type = #tpu.core_type<tc>, window_params = [{transform_indices = @transform_0, window_bounds = array<i64: 128, 52>}, {pipeline_mode = #tpu.pipeline_mode<synchronous>, transform_indices = @transform_1, window_bounds = array<i64: 13, 52>}, {pipeline_mode = #tpu.pipeline_mode<synchronous>, transform_indices = @transform_2, window_bounds = array<i64: 13, 1>}, {pipeline_mode = #tpu.pipeline_mode<synchronous>, transform_indices = @transform_3, window_bounds = array<i64: 52, 13>}, {pipeline_mode = #tpu.pipeline_mode<synchronous>, transform_indices = @transform_4, window_bounds = array<i64: 52, 1>}, {pipeline_mode = #tpu.pipeline_mode<synchronous>, transform_indices = @transform_5, window_bounds = array<i64: 1, 52>}, {pipeline_mode = #tpu.pipeline_mode<synchronous>, transform_indices = @transform_6, window_bounds = array<i64: 1, 1>}, {transform_indices = @transform_7, window_bounds = array<i64: 1, 128>}]} {
    %c0 = arith.constant 0 : index
    %c0_0 = arith.constant 0 : index
    %0 = vector.load %arg1[%c0, %c0_0] : memref<128x52xf32, #tpu.memory_space<vmem>>, vector<128x52xf32>
    %c0_1 = arith.constant 0 : index
    %c0_2 = arith.constant 0 : index
    %1 = vector.load %arg2[%c0_1, %c0_2] : memref<13x52xf32, #tpu.memory_space<vmem>>, vector<13x52xf32>
    %cst = arith.constant dense<0.000000e+00> : vector<13x128xf32>
    %2 = tpu.matmul %1, %0, %cst {dimension_numbers = #tpu.dot_dimension_numbers<[1], [1], [0], [0], [0, 0, 1, 0], [], []>} : vector<13x52xf32>, vector<128x52xf32>, vector<13x128xf32> -> vector<13x128xf32>
    %c0_3 = arith.constant 0 : index
    %c0_4 = arith.constant 0 : index
    %3 = vector.load %arg3[%c0_3, %c0_4] : memref<13x1xf32, #tpu.memory_space<vmem>>, vector<13x1xf32>
    %4 = vector.broadcast %3 : vector<13x1xf32> to vector<13x128xf32>
    %5 = arith.addf %2, %4 : vector<13x128xf32>
    %cst_5 = arith.constant 0.000000e+00 : f32
    %6 = vector.broadcast %cst_5 : f32 to vector<13x128xf32>
    %7 = arith.maximumf %5, %6 : vector<13x128xf32>
    %c0_6 = arith.constant 0 : index
    %c0_7 = arith.constant 0 : index
    %8 = vector.load %arg4[%c0_6, %c0_7] : memref<52x13xf32, #tpu.memory_space<vmem>>, vector<52x13xf32>
    %cst_8 = arith.constant dense<0.000000e+00> : vector<52x128xf32>
    %9 = tpu.matmul %8, %7, %cst_8 {dimension_numbers = #tpu.dot_dimension_numbers<[1], [0], [0], [1], [0, 0, 1, 1], [], []>} : vector<52x13xf32>, vector<13x128xf32>, vector<52x128xf32> -> vector<52x128xf32>
    %c0_9 = arith.constant 0 : index
    %c0_10 = arith.constant 0 : index
    %10 = vector.load %arg5[%c0_9, %c0_10] : memref<52x1xf32, #tpu.memory_space<vmem>>, vector<52x1xf32>
    %11 = vector.broadcast %10 : vector<52x1xf32> to vector<52x128xf32>
    %12 = arith.addf %9, %11 : vector<52x128xf32>
    %cst_11 = arith.constant 0.000000e+00 : f32
    %13 = vector.broadcast %cst_11 : f32 to vector<52x128xf32>
    %14 = arith.maximumf %12, %13 : vector<52x128xf32>
    %c0_12 = arith.constant 0 : index
    %c0_13 = arith.constant 0 : index
    %15 = vector.load %arg6[%c0_12, %c0_13] : memref<1x52xf32, #tpu.memory_space<vmem>>, vector<1x52xf32>
    %cst_14 = arith.constant dense<0.000000e+00> : vector<1x128xf32>
    %16 = tpu.matmul %15, %14, %cst_14 {dimension_numbers = #tpu.dot_dimension_numbers<[1], [0], [0], [1], [0, 0, 1, 1], [], []>} : vector<1x52xf32>, vector<52x128xf32>, vector<1x128xf32> -> vector<1x128xf32>
    %c0_15 = arith.constant 0 : index
    %c0_16 = arith.constant 0 : index
    %17 = vector.load %arg7[%c0_15, %c0_16] : memref<1x1xf32, #tpu.memory_space<vmem>>, vector<1x1xf32>
    %18 = vector.broadcast %17 : vector<1x1xf32> to vector<1x128xf32>
    %19 = arith.addf %16, %18 : vector<1x128xf32>
    %cst_17 = arith.constant 0.000000e+00 : f32
    %20 = vector.broadcast %cst_17 : f32 to vector<1x128xf32>
    %21 = arith.subf %20, %19 : vector<1x128xf32>
    %22 = math.exp %21 : vector<1x128xf32>
    %cst_18 = arith.constant 1.000000e+00 : f32
    %23 = vector.broadcast %cst_18 : f32 to vector<1x128xf32>
    %24 = arith.addf %23, %22 : vector<1x128xf32>
    %25 = tpu.reciprocal %24 {approx = true} : vector<1x128xf32> -> vector<1x128xf32>
    %c0_19 = arith.constant 0 : index
    %c0_20 = arith.constant 0 : index
    %26 = vector.load %arg8[%c0_19, %c0_20] : memref<1x128xf32, #tpu.memory_space<vmem>>, vector<1x128xf32>
    tpu.vector_store %arg8[%c0_19, %c0_20], %25 {strides = array<i32>} : memref<1x128xf32, #tpu.memory_space<vmem>>, vector<1x128xf32>,
    return
  }
  func.func @transform_0(%arg0: i32) -> (i32, i32) {
    %c0_i32 = arith.constant 0 : i32
    %c0_i32_0 = arith.constant 0 : i32
    return %arg0, %c0_i32 : i32, i32
  }
  func.func @transform_1(%arg0: i32) -> (i32, i32) {
    %c0_i32 = arith.constant 0 : i32
    %c0_i32_0 = arith.constant 0 : i32
    %c0_i32_1 = arith.constant 0 : i32
    return %c0_i32, %c0_i32_0 : i32, i32
  }
  func.func @transform_2(%arg0: i32) -> (i32, i32) {
    %c0_i32 = arith.constant 0 : i32
    %c0_i32_0 = arith.constant 0 : i32
    %c0_i32_1 = arith.constant 0 : i32
    return %c0_i32, %c0_i32_0 : i32, i32
  }
  func.func @transform_3(%arg0: i32) -> (i32, i32) {
    %c0_i32 = arith.constant 0 : i32
    %c0_i32_0 = arith.constant 0 : i32
    %c0_i32_1 = arith.constant 0 : i32
    return %c0_i32, %c0_i32_0 : i32, i32
  }
  func.func @transform_4(%arg0: i32) -> (i32, i32) {
    %c0_i32 = arith.constant 0 : i32
    %c0_i32_0 = arith.constant 0 : i32
    %c0_i32_1 = arith.constant 0 : i32
    return %c0_i32, %c0_i32_0 : i32, i32
  }
  func.func @transform_5(%arg0: i32) -> (i32, i32) {
    %c0_i32 = arith.constant 0 : i32
    %c0_i32_0 = arith.constant 0 : i32
    %c0_i32_1 = arith.constant 0 : i32
    return %c0_i32, %c0_i32_0 : i32, i32
  }
  func.func @transform_6(%arg0: i32) -> (i32, i32) {
    %c0_i32 = arith.constant 0 : i32
    %c0_i32_0 = arith.constant 0 : i32
    %c0_i32_1 = arith.constant 0 : i32
    return %c0_i32, %c0_i32_0 : i32, i32
  }
  func.func @transform_7(%arg0: i32) -> (i32, i32) {
    %c0_i32 = arith.constant 0 : i32
    %c0_i32_0 = arith.constant 0 : i32
    return %c0_i32, %arg0 : i32, i32
  }
}

</mosaic_0001>

<llo_original>
// kernel: tpu_custom_call.1
$region0: #{tpu_custom_call.1}
  #allocation0 [shape = 'u32[]', space=smem, size = 0x4, offset = 0x4, fixed_abs, tag = 'smem constant byte address 0x4 - core index']
  #allocation1 [shape = 'u32[144,128]{1,0:T(1,128)}', space=vmem, size = 0x12000, scoped, tag = 'internal scratch']
  #allocation2 [shape = 'f32[1,1]{1,0:T(1,128)S(1)}', space=vmem, size = 0x200, scoped, tag = 'scoped memory for tpu_custom_call.1']
  %s0 = inlined_call_operand.vmem [shape: f32[16,52], index: 0, kind: input, shape index: {}]
  %s1 = inlined_call_operand.vmem [shape: f32[13,52], index: 1, kind: input, shape index: {}]
  %s2 = inlined_call_operand.vmem [shape: f32[13,1], index: 2, kind: input, shape index: {}]
  %s3 = inlined_call_operand.vmem [shape: f32[52,13], index: 3, kind: input, shape index: {}]
  %s4 = inlined_call_operand.vmem [shape: f32[52,1], index: 4, kind: input, shape index: {}]
  %s5 = inlined_call_operand.vmem [shape: f32[1,52], index: 5, kind: input, shape index: {}]
  %s6 = inlined_call_operand.<no memory space> [shape: f32[1,1], index: 6, kind: input, shape index: {}]
  %s7 = inlined_call_operand.hbm [shape: f32[1,128], index: 7, kind: output, shape index: {}]
  %s8 = sld [smem:[#allocation0]]
  $region38: #{tpu_custom_call.1} parent=0
    _
  %s10 = ssub.s32 1, %s8
  %s11 = scalar_select 0, %s10, %s8
  %v12 = vstv %s6
  %13 = vst [vmem:[#allocation2] sm:$0x1] %v12
  $region1: #{tpu_custom_call.1} parent=0
    #allocation3 [shape = 'u8[512]{0}', space=vmem, size = 0x400, scoped, tag = 'output window, operand 0, single buffered']
    #allocation4 [shape = 's32[1]{0}', space=sflag, size = 0x4, scoped, tag = 'scoped memory for tpu_custom_call.1']
    %14 = vsyncpa [#allocation4], 0
    // Predicated region
    $region2: #{tpu_custom_call.1} parent=1 // pred_check
      _
    $region3: #{tpu_custom_call.1} parent=1 // pred_check_branch
      %16 = sbr.rel (0) target = $region5
    $region4: #{tpu_custom_call.1} parent=1 // pred_region
      _
    $region5: #{tpu_custom_call.1} parent=1 // pred_fallthru
      _
    // Predicated region
    $region6: #{tpu_custom_call.1} parent=1 // pred_check
      _
    $region7: #{tpu_custom_call.1} parent=1 // pred_check_branch
      %18 = sbr.rel (0) target = $region9
    $region8: #{tpu_custom_call.1} parent=1 // pred_region
      _
    $region9: #{tpu_custom_call.1} parent=1 // pred_fallthru
      _
    // Predicated region
    $region10: #{tpu_custom_call.1} parent=1 // pred_check
      _
    $region11: #{tpu_custom_call.1} parent=1 // pred_check_branch
      %20 = sbr.rel (0) target = $region13
    $region12: #{tpu_custom_call.1} parent=1 // pred_region
      _
    $region13: #{tpu_custom_call.1} parent=1 // pred_fallthru
      _
    // Predicated region
    $region14: #{tpu_custom_call.1} parent=1 // pred_check
      _
    $region15: #{tpu_custom_call.1} parent=1 // pred_check_branch
      %22 = sbr.rel (0) target = $region17
    $region16: #{tpu_custom_call.1} parent=1 // pred_region
      _
    $region17: #{tpu_custom_call.1} parent=1 // pred_fallthru
      _
    // Predicated region
    $region18: #{tpu_custom_call.1} parent=1 // pred_check
      _
    $region19: #{tpu_custom_call.1} parent=1 // pred_check_branch
      %24 = sbr.rel (0) target = $region21
    $region20: #{tpu_custom_call.1} parent=1 // pred_region
      _
    $region21: #{tpu_custom_call.1} parent=1 // pred_fallthru
      _
    // Predicated region
    $region22: #{tpu_custom_call.1} parent=1 // pred_check
      _
    $region23: #{tpu_custom_call.1} parent=1 // pred_check_branch
      %26 = sbr.rel (0) target = $region25
    $region24: #{tpu_custom_call.1} parent=1 // pred_region
      _
    $region25: #{tpu_custom_call.1} parent=1 // pred_fallthru
      _
    // Predicated region
    $region26: #{tpu_custom_call.1} parent=1 // pred_check
      _
    $region27: #{tpu_custom_call.1} parent=1 // pred_check_branch
      %28 = sbr.rel (0) target = $region29
    $region28: #{tpu_custom_call.1} parent=1 // pred_region
      _
    $region29: #{tpu_custom_call.1} parent=1 // pred_fallthru
      _
    %v29 = vld [vmem:[%s0] sm:$0xff]
    %v30 = vld [vmem:[%s0 + $0x8] sm:$0xff]
    %v31 = vld [vmem:[%s0 + $0x10] sm:$0xff]
    %v32 = vld [vmem:[%s0 + $0x18] sm:$0xff]
    %v33 = vld [vmem:[%s0 + $0x20] sm:$0xff]
    %v34 = vld [vmem:[%s0 + $0x28] sm:$0xff]
    %v35 = vld [vmem:[%s0 + $0x30] sm:$0xff]
    %v36 = vld [vmem:[%s0 + $0x38] sm:$0xff]
    %v37 = vld [vmem:[%s0 + $0x40] sm:$0xff]
    %v38 = vld [vmem:[%s0 + $0x48] sm:$0xff]
    %v39 = vld [vmem:[%s0 + $0x50] sm:$0xff]
    %v40 = vld [vmem:[%s0 + $0x58] sm:$0xff]
    %v41 = vld [vmem:[%s0 + $0x60] sm:$0xff]
    %v42 = vld [vmem:[%s0 + $0x68] sm:$0xff]
    %v43 = vld [vmem:[%s0 + $0x70] sm:$0xff]
    %v44 = vld [vmem:[%s0 + $0x78] sm:$0xff]
    %v45 = vld [vmem:[%s1] sm:$0xff]
    %v46 = vld [vmem:[%s1 + $0x8] sm:$0x1f]
    %v47 = vld [vmem:[%s2] sm:$0xff]
    %v48 = vld [vmem:[%s2 + $0x8] sm:$0x1f]
    %50 = vset.pattern.permute.xlu0 0
    %51 = vperm.xlu0 %50, %v47
    %v52 = vpop.permute.xlu0 %51
    %55 = vset.pattern.permute.xlu0 0
    %56 = vperm.xlu0 %55, %v48
    %v57 = vpop.permute.xlu0 %56
    %vm59 = vcmask 424960
    %v61 = vsel %vm59, %v45, 0
    %v64 = vsel %vm59, %v46, 0
    %v67 = vsel %vm59, %v29, 0
    %v70 = vsel %vm59, %v30, 0
    %v73 = vsel %vm59, %v31, 0
    %v76 = vsel %vm59, %v32, 0
    %v79 = vsel %vm59, %v33, 0
    %v82 = vsel %vm59, %v34, 0
    %v85 = vsel %vm59, %v35, 0
    %v88 = vsel %vm59, %v36, 0
    %v91 = vsel %vm59, %v37, 0
    %v94 = vsel %vm59, %v38, 0
    %v97 = vsel %vm59, %v39, 0
    %v100 = vsel %vm59, %v40, 0
    %v103 = vsel %vm59, %v41, 0
    %v106 = vsel %vm59, %v42, 0
    %v109 = vsel %vm59, %v43, 0
    %v112 = vsel %vm59, %v44, 0
    %114 = vmatprep.subr.mxu0 0.0
    %115 = vmatpush1.xpose.msra.mxu0 %v112
    %116 = vmatprep.subr.mxu0 0.0
    %117 = vmatpush1.xpose.msra.mxu0 %v109
    %118 = vmatprep.subr.mxu0 0.0
    %119 = vmatpush1.xpose.msra.mxu0 %v106
    %120 = vmatprep.subr.mxu0 0.0
    %121 = vmatpush1.xpose.msra.mxu0 %v103
    %122 = vmatprep.subr.mxu0 0.0
    %123 = vmatpush1.xpose.msra.mxu0 %v100
    %124 = vmatprep.subr.mxu0 0.0
    %125 = vmatpush1.xpose.msra.mxu0 %v97
    %126 = vmatprep.subr.mxu0 0.0
    %127 = vmatpush1.xpose.msra.mxu0 %v94
    %128 = vmatprep.subr.mxu0 0.0
    %129 = vmatpush1.xpose.msra.mxu0 %v91
    %130 = vmatprep.subr.mxu0 0.0
    %131 = vmatpush1.xpose.msra.mxu0 %v88
    %132 = vmatprep.subr.mxu0 0.0
    %133 = vmatpush1.xpose.msra.mxu0 %v85
    %134 = vmatprep.subr.mxu0 0.0
    %135 = vmatpush1.xpose.msra.mxu0 %v82
    %136 = vmatprep.subr.mxu0 0.0
    %137 = vmatpush1.xpose.msra.mxu0 %v79
    %138 = vmatprep.subr.mxu0 0.0
    %139 = vmatpush1.xpose.msra.mxu0 %v76
    %140 = vmatprep.subr.mxu0 0.0
    %141 = vmatpush1.xpose.msra.mxu0 %v73
    %142 = vmatprep.subr.mxu0 0.0
    %143 = vmatpush1.xpose.msra.mxu0 %v70
    %144 = vmatprep.subr.mxu0 0.0
    %145 = vmatpush1.xpose.msra.mxu0 %v67
    %146 = vmatprep.subr.mxu0 0.0
    %147 = vmatpush2.xpose.msra.mxu0 0.0
    %148 = vmatprep.subr.mxu0 0.0
    %149 = vmatpush2.xpose.msra.mxu0 0.0
    %150 = vmatprep.subr.mxu0 0.0
    %151 = vmatpush2.xpose.msra.mxu0 0.0
    %152 = vmatprep.subr.mxu0 0.0
    %153 = vmatpush2.xpose.msra.mxu0 0.0
    %154 = vmatprep.subr.mxu0 0.0
    %155 = vmatpush2.xpose.msra.mxu0 0.0
    %156 = vmatprep.subr.mxu0 0.0
    %157 = vmatpush2.xpose.msra.mxu0 0.0
    %158 = vmatprep.subr.mxu0 0.0
    %159 = vmatpush2.xpose.msra.mxu0 0.0
    %160 = vmatprep.subr.mxu0 0.0
    %161 = vmatpush2.xpose.msra.mxu0 0.0
    %162 = vmatprep.subr.mxu0 0.0
    %163 = vmatpush2.xpose.msra.mxu0 0.0
    %164 = vmatprep.subr.mxu0 0.0
    %165 = vmatpush2.xpose.msra.mxu0 0.0
    %166 = vmatprep.subr.mxu0 0.0
    %167 = vmatpush2.xpose.msra.mxu0 0.0
    %168 = vmatprep.subr.mxu0 0.0
    %169 = vmatpush2.xpose.msra.mxu0 0.0
    %170 = vmatprep.subr.mxu0 0.0
    %171 = vmatpush2.xpose.msra.mxu0 0.0
    %172 = vmatprep.subr.mxu0 0.0
    %173 = vmatpush2.xpose.msra.mxu0 0.0
    %174 = vmatprep.subr.mxu0 0.0
    %175 = vmatpush2.xpose.msra.mxu0 0.0
    %176 = vmatprep.subr.mxu0 0.0
    %177 = vmatpush2.xpose.msra.mxu0 0.0
    %178 = vmatprep.mubr.f32.mxu0 0.0
    %179 = vmatmul.mubr.f32.gmra.mxu0 %v61
    %v180 = vpop.f32.mrf.mxu0
    %v181 = vadd.f32 %v52, %v180
    %v182 = vpop.f32.mrf.mxu0
    %183 = vmatprep.mubr.f32.mxu0 0.0
    %184 = vmatmul.mubr.f32.gmra.mxu0 %v64
    %v185 = vpop.f32.mrf.mxu0
    %v186 = vadd.f32 %v57, %v185
    %v187 = vpop.f32.mrf.mxu0
    %188 = vdwg.mxu0
    %v189 = vmax.f32 %v181, 0.0
    %v190 = vmax.f32 %v186, 0.0
    %v191 = vld [vmem:[%s3] sm:$0xff]
    %v192 = vld [vmem:[%s3 + $0x8] sm:$0xff]
    %v193 = vld [vmem:[%s3 + $0x10] sm:$0xff]
    %v194 = vld [vmem:[%s3 + $0x18] sm:$0xff]
    %v195 = vld [vmem:[%s3 + $0x20] sm:$0xff]
    %v196 = vld [vmem:[%s3 + $0x28] sm:$0xff]
    %v197 = vld [vmem:[%s3 + $0x30] sm:$0xf]
    %v198 = vld [vmem:[%s4] sm:$0xff]
    %v199 = vld [vmem:[%s4 + $0x8] sm:$0xff]
    %v200 = vld [vmem:[%s4 + $0x10] sm:$0xff]
    %v201 = vld [vmem:[%s4 + $0x18] sm:$0xff]
    %v202 = vld [vmem:[%s4 + $0x20] sm:$0xff]
    %v203 = vld [vmem:[%s4 + $0x28] sm:$0xff]
    %v204 = vld [vmem:[%s4 + $0x30] sm:$0xf]
    %206 = vset.pattern.permute.xlu0 0
    %207 = vperm.xlu0 %206, %v198
    %v208 = vpop.permute.xlu0 %207
    %211 = vset.pattern.permute.xlu0 0
    %212 = vperm.xlu0 %211, %v199
    %v213 = vpop.permute.xlu0 %212
    %216 = vset.pattern.permute.xlu0 0
    %217 = vperm.xlu0 %216, %v200
    %v218 = vpop.permute.xlu0 %217
    %221 = vset.pattern.permute.xlu0 0
    %222 = vperm.xlu0 %221, %v201
    %v223 = vpop.permute.xlu0 %222
    %226 = vset.pattern.permute.xlu0 0
    %227 = vperm.xlu0 %226, %v202
    %v228 = vpop.permute.xlu0 %227
    %231 = vset.pattern.permute.xlu0 0
    %232 = vperm.xlu0 %231, %v203
    %v233 = vpop.permute.xlu0 %232
    %236 = vset.pattern.permute.xlu0 0
    %237 = vperm.xlu0 %236, %v204
    %v238 = vpop.permute.xlu0 %237
    %vm240 = vcmask 105472
    %v242 = vsel %vm240, %v191, 0
    %v245 = vsel %vm240, %v192, 0
    %v248 = vsel %vm240, %v193, 0
    %v251 = vsel %vm240, %v194, 0
    %v254 = vsel %vm240, %v195, 0
    %v257 = vsel %vm240, %v196, 0
    %v260 = vsel %vm240, %v197, 0
    %vm262 = vcmask 1044480
    %v264 = vsel %vm262, %v190, 0
    %266 = vmatprep.subr.mxu0 0.0
    %267 = vmatpush1.msra.mxu0 0.0
    %268 = vmatprep.subr.mxu0 0.0
    %269 = vmatpush1.msra.mxu0 0.0
    %270 = vmatprep.subr.mxu0 0.0
    %271 = vmatpush1.msra.mxu0 0.0
    %272 = vmatprep.subr.mxu0 0.0
    %273 = vmatpush1.msra.mxu0 0.0
    %274 = vmatprep.subr.mxu0 0.0
    %275 = vmatpush1.msra.mxu0 0.0
    %276 = vmatprep.subr.mxu0 0.0
    %277 = vmatpush1.msra.mxu0 0.0
    %278 = vmatprep.subr.mxu0 0.0
    %279 = vmatpush1.msra.mxu0 0.0
    %280 = vmatprep.subr.mxu0 0.0
    %281 = vmatpush1.msra.mxu0 0.0
    %282 = vmatprep.subr.mxu0 0.0
    %283 = vmatpush1.msra.mxu0 0.0
    %284 = vmatprep.subr.mxu0 0.0
    %285 = vmatpush1.msra.mxu0 0.0
    %286 = vmatprep.subr.mxu0 0.0
    %287 = vmatpush1.msra.mxu0 0.0
    %288 = vmatprep.subr.mxu0 0.0
    %289 = vmatpush1.msra.mxu0 0.0
    %290 = vmatprep.subr.mxu0 0.0
    %291 = vmatpush1.msra.mxu0 0.0
    %292 = vmatprep.subr.mxu0 0.0
    %293 = vmatpush1.msra.mxu0 0.0
    %294 = vmatprep.subr.mxu0 0.0
    %295 = vmatpush1.msra.mxu0 %v264
    %296 = vmatprep.subr.mxu0 0.0
    %297 = vmatpush1.msra.mxu0 %v189
    %298 = vmatprep.subr.mxu0 0.0
    %299 = vmatpush2.msra.mxu0 0.0
    %300 = vmatprep.subr.mxu0 0.0
    %301 = vmatpush2.msra.mxu0 0.0
    %302 = vmatprep.subr.mxu0 0.0
    %303 = vmatpush2.msra.mxu0 0.0
    %304 = vmatprep.subr.mxu0 0.0
    %305 = vmatpush2.msra.mxu0 0.0
    %306 = vmatprep.subr.mxu0 0.0
    %307 = vmatpush2.msra.mxu0 0.0
    %308 = vmatprep.subr.mxu0 0.0
    %309 = vmatpush2.msra.mxu0 0.0
    %310 = vmatprep.subr.mxu0 0.0
    %311 = vmatpush2.msra.mxu0 0.0
    %312 = vmatprep.subr.mxu0 0.0
    %313 = vmatpush2.msra.mxu0 0.0
    %314 = vmatprep.subr.mxu0 0.0
    %315 = vmatpush2.msra.mxu0 0.0
    %316 = vmatprep.subr.mxu0 0.0
    %317 = vmatpush2.msra.mxu0 0.0
    %318 = vmatprep.subr.mxu0 0.0
    %319 = vmatpush2.msra.mxu0 0.0
    %320 = vmatprep.subr.mxu0 0.0
    %321 = vmatpush2.msra.mxu0 0.0
    %322 = vmatprep.subr.mxu0 0.0
    %323 = vmatpush2.msra.mxu0 0.0
    %324 = vmatprep.subr.mxu0 0.0
    %325 = vmatpush2.msra.mxu0 0.0
    %326 = vmatprep.subr.mxu0 0.0
    %327 = vmatpush2.msra.mxu0 0.0
    %328 = vmatprep.subr.mxu0 0.0
    %329 = vmatpush2.msra.mxu0 0.0
    %330 = vmatprep.mubr.f32.mxu0 0.0
    %331 = vmatmul.mubr.f32.gmra.mxu0 %v242
    %v332 = vpop.f32.mrf.mxu0
    %v333 = vadd.f32 %v208, %v332
    %v334 = vpop.f32.mrf.mxu0
    %335 = vmatprep.mubr.f32.mxu0 0.0
    %336 = vmatmul.mubr.f32.gmra.mxu0 %v245
    %v337 = vpop.f32.mrf.mxu0
    %v338 = vadd.f32 %v213, %v337
    %v339 = vpop.f32.mrf.mxu0
    %340 = vmatprep.mubr.f32.mxu0 0.0
    %341 = vmatmul.mubr.f32.gmra.mxu0 %v248
    %v342 = vpop.f32.mrf.mxu0
    %v343 = vadd.f32 %v218, %v342
    %v344 = vpop.f32.mrf.mxu0
    %345 = vmatprep.mubr.f32.mxu0 0.0
    %346 = vmatmul.mubr.f32.gmra.mxu0 %v251
    %v347 = vpop.f32.mrf.mxu0
    %v348 = vadd.f32 %v223, %v347
    %v349 = vpop.f32.mrf.mxu0
    %350 = vmatprep.mubr.f32.mxu0 0.0
    %351 = vmatmul.mubr.f32.gmra.mxu0 %v254
    %v352 = vpop.f32.mrf.mxu0
    %v353 = vadd.f32 %v228, %v352
    %v354 = vpop.f32.mrf.mxu0
    %355 = vmatprep.mubr.f32.mxu0 0.0
    %356 = vmatmul.mubr.f32.gmra.mxu0 %v257
    %v357 = vpop.f32.mrf.mxu0
    %v358 = vadd.f32 %v233, %v357
    %v359 = vpop.f32.mrf.mxu0
    %360 = vmatprep.mubr.f32.mxu0 0.0
    %361 = vmatmul.mubr.f32.gmra.mxu0 %v260
    %v362 = vpop.f32.mrf.mxu0
    %v363 = vadd.f32 %v238, %v362
    %v364 = vpop.f32.mrf.mxu0
    %365 = vdwg.mxu0
    %v366 = vmax.f32 %v333, 0.0
    %v367 = vmax.f32 %v338, 0.0
    %v368 = vmax.f32 %v343, 0.0
    %v369 = vmax.f32 %v348, 0.0
    %v370 = vmax.f32 %v353, 0.0
    %v371 = vmax.f32 %v358, 0.0
    %v372 = vmax.f32 %v363, 0.0
    %v373 = vld [vmem:[%s5] sm:$0x1]
    %v374 = vld [vmem:[#allocation2] sm:$0x1]
    %376 = vset.pattern.permute.xlu0 0
    %377 = vperm.xlu0 %376, %v374
    %v378 = vpop.permute.xlu0 %377
    %v380 = vlaneseq
    %v381 = vshrl.u32 %v380, 7
    %v382 = vsub.s32 0, %v381
    %v383 = vrot.slane %v378, %v382
    %v385 = vsel %vm59, %v373, 0
    %vm387 = vcmask 1043456
    %v389 = vsel %vm387, %v372, 0
    %391 = vmatprep.subr.mxu0 0.0
    %392 = vmatpush1.msra.mxu0 0.0
    %393 = vmatprep.subr.mxu0 0.0
    %394 = vmatpush1.msra.mxu0 0.0
    %395 = vmatprep.subr.mxu0 0.0
    %396 = vmatpush1.msra.mxu0 0.0
    %397 = vmatprep.subr.mxu0 0.0
    %398 = vmatpush1.msra.mxu0 0.0
    %399 = vmatprep.subr.mxu0 0.0
    %400 = vmatpush1.msra.mxu0 0.0
    %401 = vmatprep.subr.mxu0 0.0
    %402 = vmatpush1.msra.mxu0 0.0
    %403 = vmatprep.subr.mxu0 0.0
    %404 = vmatpush1.msra.mxu0 0.0
    %405 = vmatprep.subr.mxu0 0.0
    %406 = vmatpush1.msra.mxu0 0.0
    %407 = vmatprep.subr.mxu0 0.0
    %408 = vmatpush1.msra.mxu0 0.0
    %409 = vmatprep.subr.mxu0 0.0
    %410 = vmatpush1.msra.mxu0 %v389
    %411 = vmatprep.subr.mxu0 0.0
    %412 = vmatpush1.msra.mxu0 %v371
    %413 = vmatprep.subr.mxu0 0.0
    %414 = vmatpush1.msra.mxu0 %v370
    %415 = vmatprep.subr.mxu0 0.0
    %416 = vmatpush1.msra.mxu0 %v369
    %417 = vmatprep.subr.mxu0 0.0
    %418 = vmatpush1.msra.mxu0 %v368
    %419 = vmatprep.subr.mxu0 0.0
    %420 = vmatpush1.msra.mxu0 %v367
    %421 = vmatprep.subr.mxu0 0.0
    %422 = vmatpush1.msra.mxu0 %v366
    %423 = vmatprep.subr.mxu0 0.0
    %424 = vmatpush2.msra.mxu0 0.0
    %425 = vmatprep.subr.mxu0 0.0
    %426 = vmatpush2.msra.mxu0 0.0
    %427 = vmatprep.subr.mxu0 0.0
    %428 = vmatpush2.msra.mxu0 0.0
    %429 = vmatprep.subr.mxu0 0.0
    %430 = vmatpush2.msra.mxu0 0.0
    %431 = vmatprep.subr.mxu0 0.0
    %432 = vmatpush2.msra.mxu0 0.0
    %433 = vmatprep.subr.mxu0 0.0
    %434 = vmatpush2.msra.mxu0 0.0
    %435 = vmatprep.subr.mxu0 0.0
    %436 = vmatpush2.msra.mxu0 0.0
    %437 = vmatprep.subr.mxu0 0.0
    %438 = vmatpush2.msra.mxu0 0.0
    %439 = vmatprep.subr.mxu0 0.0
    %440 = vmatpush2.msra.mxu0 0.0
    %441 = vmatprep.subr.mxu0 0.0
    %442 = vmatpush2.msra.mxu0 0.0
    %443 = vmatprep.subr.mxu0 0.0
    %444 = vmatpush2.msra.mxu0 0.0
    %445 = vmatprep.subr.mxu0 0.0
    %446 = vmatpush2.msra.mxu0 0.0
    %447 = vmatprep.subr.mxu0 0.0
    %448 = vmatpush2.msra.mxu0 0.0
    %449 = vmatprep.subr.mxu0 0.0
    %450 = vmatpush2.msra.mxu0 0.0
    %451 = vmatprep.subr.mxu0 0.0
    %452 = vmatpush2.msra.mxu0 0.0
    %453 = vmatprep.subr.mxu0 0.0
    %454 = vmatpush2.msra.mxu0 0.0
    %455 = vmatprep.mubr.f32.mxu0 0.0
    %456 = vmatmul.mubr.f32.gmra.mxu0 %v385
    %v457 = vpop.f32.mrf.mxu0
    %v458 = vadd.f32 %v383, %v457
    %v459 = vpop.f32.mrf.mxu0
    %460 = vdwg.mxu0
    %v461 = vsub.f32 0.0, %v458
    %v462 = vmul.f32 %v461, 1.442695
    %v463 = vpow.pop %v462
    %v464 = vadd.f32 %v463, 1.0
    %v465 = vrcp.pop %v464
    %466 = vst [vmem:[#allocation3] sm:$0x1] %v465
    // Predicated region
    $region30: #{tpu_custom_call.1} parent=1 // pred_check
      _
    $region31: #{tpu_custom_call.1} parent=1 // pred_check_branch
      %468 = sbr.rel (0) target = $region33
    $region32: #{tpu_custom_call.1} parent=1 // pred_region
      %s470 = ssub.s32 16, 16
      %471 = vsyncadd [#allocation4], %s470
      %s473 = sshll.u32 [#allocation3], 4
      %s474 = int_to_ptr.vmem [resolvable:$true] %s473
      %476 = dma.vmem_to_hbm [thread:$0]  %s474, 16, %s7, [#allocation4]
    $region33: #{tpu_custom_call.1} parent=1 // pred_fallthru
      _
    // Predicated region
    $region34: #{tpu_custom_call.1} parent=1 // pred_check
      _
    $region35: #{tpu_custom_call.1} parent=1 // pred_check_branch
      %478 = sbr.rel (0) target = $region37
    $region36: #{tpu_custom_call.1} parent=1 // pred_region
      %479 = dma.done [#allocation4], 16
    $region37: #{tpu_custom_call.1} parent=1 // pred_fallthru
      _
    %480 = vsyncpa [#allocation4], 1

</llo_original>
